<compile_context>
chip_gen: v6e
topology: v6e:2x2x1
jax: 0.10.0
libtpu: 0.0.40
codegen_flags: <defaults>
</compile_context>

<pallas_src>
import math

import jax
import jax.numpy as jnp
from jax.experimental import pallas as pl
from jax.experimental.pallas import tpu as pltpu


# ---------------------------------------------------------------------------
# Kernel
# ---------------------------------------------------------------------------
def _resize_crop_kernel(x_ref, wh_ref, ww_ref, o_ref):
    """Fused bilinear resize + center crop for a block of B image planes.

    x_ref : (B, Hp, W)       input planes (H zero-padded to sublane multiple Hp)
    wh_ref: (L, Hp)          row-interp weights (crop fused, zero cols for padded rows)
    ww_ref: (W, L)           col-interp weights (crop fused, pre-transposed)
    o_ref : (1, L, B*L)      lane-dense output slab (planes packed along lanes)
    """
    B, Hp, W = x_ref.shape
    L = wh_ref.shape[0]
    cdt = ww_ref.dtype                           # compute dtype (bf16 or f32)

    # --- W contraction: ONE MXU matmul with M = B*Hp rows. -----------------
    # Layout-free flatten: Hp is padded host-side to the sublane multiple.
    x2d = x_ref[...].reshape(B * Hp, W).astype(cdt)
    t = jnp.dot(x2d, ww_ref[...], preferred_element_type=jnp.float32)   # (B*Hp, L)
    t = t.astype(cdt)                            # cast once -> f32 intermediate dies here

    # --- Rearrange (B*Hp, L) -> (Hp, B*L): planes move onto the lane axis. --
    # Static sublane-aligned slices + lane concat (cheap XLU/copy work) so the second
    # contraction is a single matmul with a lane-dense (>=128 wide) output.
    if B > 1:
        t = jnp.concatenate([t[b * Hp:(b + 1) * Hp, :] for b in range(B)], axis=-1)

    # --- H contraction: one matmul, one unmasked (L, B*L) store. -----------
    out = jnp.dot(wh_ref[...], t, preferred_element_type=jnp.float32)   # (L, B*L)
    o_ref[0] = out.astype(o_ref.dtype)


# ---------------------------------------------------------------------------
# Host-side helpers
# ---------------------------------------------------------------------------
def _round_up(n: int, m: int) -> int:
    return ((n + m - 1) // m) * m


def _sublanes(dtype) -> int:
    """Sublane multiple for a dtype (8 for f32, 16 for bf16, 32 for int8)."""
    return max(8, 32 // jnp.dtype(dtype).itemsize)


def _physical_vmem_bytes() -> int:
    """Per-core physical VMEM; conservative (v7x-sized) fallback if the query fails."""
    try:
        return int(pltpu.get_tpu_info().vmem_capacity_bytes)
    except Exception:
        return 64 * 2**20


def _single_buffering_supported() -> bool:
    if not hasattr(pl, "Buffered"):
        return False
    try:
        pl.BlockSpec((8, 128), lambda i: (0, 0), pipeline_mode=pl.Buffered(1))
        return True
    except (TypeError, ValueError):
        return False


def _weight_spec(shape, single_buffered: bool) -> pl.BlockSpec:
    """Constant-across-the-grid weight block; single-buffer when supported."""
    index_map = lambda i: (0, 0)
    if single_buffered:
        return pl.BlockSpec(shape, index_map, pipeline_mode=pl.Buffered(1))
    return pl.BlockSpec(shape, index_map)


def _bilinear_rows(old_size: int, new_size: int, crop_start: int, crop_len: int):
    """Rows of the 1-D bilinear resize matrix (align_corners=False, no antialias),
    restricted to the center-cropped output window. Shape: (crop_len, old_size), f32."""
    dst = jnp.arange(crop_len, dtype=jnp.float32) + float(crop_start)
    scale = old_size / new_size
    src = (dst + 0.5) * scale - 0.5
    src = jnp.maximum(src, 0.0)
    x0 = jnp.minimum(jnp.floor(src).astype(jnp.int32), old_size - 1)
    x1 = jnp.minimum(x0 + 1, old_size - 1)
    lam = src - x0.astype(jnp.float32)
    rows = jnp.arange(crop_len)
    w = jnp.zeros((crop_len, old_size), jnp.float32)
    w = w.at[rows, x0].add(1.0 - lam)
    w = w.at[rows, x1].add(lam)
    return w


def _geometry(old_h: int, old_w: int, multiple: int):
    """Replicates torchvision F.resize(int size) + F.center_crop geometry."""
    min_length = min(old_h, old_w)
    new_length = int(math.ceil(min_length / multiple) * multiple)
    if old_w <= old_h:
        resized_w = new_length
        resized_h = int(new_length * old_h / old_w)
    else:
        resized_h = new_length
        resized_w = int(new_length * old_w / old_h)
    # NOTE: Python round() (banker's rounding) matches torchvision's center_crop offsets.
    crop_top = int(round((resized_h - new_length) / 2.0))
    crop_left = int(round((resized_w - new_length) / 2.0))
    return new_length, resized_h, resized_w, crop_top, crop_left


def _vmem_plan(n_img, Hp, W, L, in_dtype, out_dtype, cdt, single_buf_weights, phys_vmem):
    """Pick planes-per-step `batch` and an explicit vmem limit, chip- and dtype-aware."""
    in_sz = jnp.dtype(in_dtype).itemsize
    out_sz = jnp.dtype(out_dtype).itemsize
    c_sz = jnp.dtype(cdt).itemsize

    # Chip-aware block budget: ~32 MiB on 64-MiB parts (v7x), ~90 MiB on 128-MiB parts.
    budget = max(16 * 2**20, min(int(0.70 * phys_vmem), phys_vmem - 32 * 2**20))

    w_bytes = (_round_up(L, _sublanes(cdt)) * _round_up(Hp, 128)
               + _round_up(W, _sublanes(cdt)) * _round_up(L, 128)) * c_sz
    if not single_buf_weights:
        w_bytes *= 2        # double-buffered fallback is accounted for explicitly

    def step_bytes(b):
        x_blk = b * _round_up(Hp, _sublanes(in_dtype)) * _round_up(W, 128) * in_sz
        o_blk = _round_up(L, _sublanes(out_dtype)) * _round_up(b * L, 128) * out_sz
        x_cast = (0 if jnp.dtype(in_dtype) == jnp.dtype(cdt)
                  else b * _round_up(Hp, _sublanes(cdt)) * _round_up(W, 128) * c_sz)
        t_f32 = b * Hp * _round_up(L, 128) * 4
        t_c = b * Hp * _round_up(L, 128) * c_sz
        t2_c = _round_up(Hp, _sublanes(cdt)) * _round_up(b * L, 128) * c_sz
        o_f32 = _round_up(L, 8) * _round_up(b * L, 128) * 4
        return 2 * x_blk + 2 * o_blk + x_cast + t_f32 + t_c + t2_c + o_f32

    # Never collapse the grid to one step when n_img > 1 (keeps pipelining + megacore).
    cap = min(32, n_img if n_img == 1 else n_img // 2)
    feasible = [b for b in range(1, cap + 1)
                if n_img % b == 0 and w_bytes + step_bytes(b) <= budget]
    if not feasible:
        feasible = [1]
    # Prefer an even number of grid steps so v7x can split the parallel axis over 2 TCs.
    even_steps = [b for b in feasible if (n_img // b) % 2 == 0]
    batch = max(even_steps) if even_steps else max(feasible)

    needed = w_bytes + step_bytes(batch)
    vmem_limit = int(min(max(needed + 8 * 2**20, 32 * 2**20), phys_vmem - 4 * 2**20))
    return batch, vmem_limit


# ---------------------------------------------------------------------------
# Public wrapper
# ---------------------------------------------------------------------------
def optional_resize_center_crop_to_multiple(x: jax.Array, multiple: int = 64, *,
                                            allow_bf16_mxu: bool = True) -> jax.Array:
    """JAX/Pallas port of OptionalResizeCenterCropToMultiple.forward. x: (..., H, W)."""
    old_h, old_w = x.shape[-2:]

    # Shape-only branch -> resolved statically at trace time (exactly like the torch code).
    if old_h % multiple == 0 and old_w % multiple == 0:
        return x

    L, resized_h, resized_w, crop_top, crop_left = _geometry(old_h, old_w, multiple)

    # Compute dtype for the MXU operands. bf16 operands + f32 accumulation is the fast path
    # (3-6x on v5e); error vs true f32 bilinear is ~1e-3 relative (2-tap convex combinations).
    cdt = jnp.bfloat16 if (x.dtype == jnp.bfloat16 or allow_bf16_mxu) else jnp.float32

    wh = _bilinear_rows(old_h, resized_h, crop_top, L)        # (L, H) f32
    ww = _bilinear_rows(old_w, resized_w, crop_left, L).T     # (W, L) f32

    lead = x.shape[:-2]
    n_img = int(math.prod(lead)) if lead else 1
    xf = x.reshape((n_img, old_h, old_w))

    # Pad H to the sublane multiple of both storage and compute dtypes so the in-kernel
    # (B, Hp, W) -> (B*Hp, W) flatten is layout-free (avoids a per-step VMEM re-tile).
    # wh gets matching zero columns, so padded rows contribute nothing.
    hp_align = max(_sublanes(x.dtype), _sublanes(cdt))
    Hp = _round_up(old_h, hp_align)
    if Hp != old_h:
        xf = jnp.pad(xf, ((0, 0), (0, Hp - old_h), (0, 0)))
        wh = jnp.pad(wh, ((0, 0), (0, Hp - old_h)))
    wh = wh.astype(cdt)
    ww = ww.astype(cdt)

    single_buf = _single_buffering_supported()
    phys_vmem = _physical_vmem_bytes()
    batch, vmem_limit = _vmem_plan(n_img, Hp, old_w, L, x.dtype, x.dtype, cdt,
                                   single_buf, phys_vmem)
    n_steps = n_img // batch

    flops = n_img * (2 * Hp * old_w * L + 2 * Hp * L * L)
    bytes_accessed = (n_img * (old_h * old_w + L * L) * jnp.dtype(x.dtype).itemsize
                      + (L * Hp + old_w * L) * jnp.dtype(cdt).itemsize)

    out = pl.pallas_call(
        _resize_crop_kernel,
        out_shape=jax.ShapeDtypeStruct((n_steps, L, batch * L), x.dtype),
        grid_spec=pltpu.PrefetchScalarGridSpec(
            num_scalar_prefetch=0,
            grid=(n_steps,),
            in_specs=[
                pl.BlockSpec((batch, Hp, old_w), lambda i: (i, 0, 0)),
                _weight_spec((L, Hp), single_buf),
                _weight_spec((old_w, L), single_buf),
            ],
            out_specs=pl.BlockSpec((1, L, batch * L), lambda i: (i, 0, 0)),
        ),
        compiler_params=pltpu.CompilerParams(
            dimension_semantics=("parallel",),
            vmem_limit_bytes=vmem_limit,
        ),
        cost_estimate=pl.CostEstimate(
            flops=int(flops), transcendentals=0, bytes_accessed=int(bytes_accessed)),
    )(xf, wh, ww)

    # Layout plumbing only: un-interleave the lane-packed planes back to (n_img, L, L).
    if batch > 1:
        out = out.reshape(n_steps, L, batch, L).transpose(0, 2, 1, 3)
    out = out.reshape((n_img, L, L))
    return out.reshape(lead + (L, L))


# ---------------------------------------------------------------------------
# Pure-JAX ground-truth reference (full f32 bilinear + crop, no Pallas)
# ---------------------------------------------------------------------------
def _reference_bilinear(x: jax.Array, multiple: int = 64) -> jax.Array:
    old_h, old_w = x.shape[-2:]
    if old_h % multiple == 0 and old_w % multiple == 0:
        return x
    L, rh, rw, crop_top, crop_left = _geometry(old_h, old_w, multiple)
    wh = _bilinear_rows(old_h, rh, crop_top, L)        # (L, H)
    ww = _bilinear_rows(old_w, rw, crop_left, L)       # (L, W)
    xf = x.astype(jnp.float32)
    hi = jax.lax.Precision.HIGHEST
    t = jnp.einsum("lw,...hw->...hl", ww, xf, precision=hi)      # (..., H, L)
    return jnp.einsum("lh,...hm->...lm", wh, t, precision=hi)    # (..., L, L) f32


if __name__ == "__main__":
    multiple = 64

    # Case 1: non-multiple spatial dims -> resize shorter edge to 64 + center crop to 64x64.
    x = jax.random.uniform(jax.random.PRNGKey(0), (2, 4, 16, 20), dtype=jnp.float32)
    y = jax.block_until_ready(optional_resize_center_crop_to_multiple(x, multiple))
    assert y.shape == (2, 4, 64, 64) and y.dtype == x.dtype, (y.shape, y.dtype)
    ref = _reference_bilinear(x, multiple)
    err = float(jnp.max(jnp.abs(y.astype(jnp.float32) - ref)))
    assert err < 2.5e-2, err

    # Case 2: already a multiple -> identity pass-through.
    x2 = jax.random.uniform(jax.random.PRNGKey(1), (2, 4, 64, 64), dtype=jnp.float32)
    y2 = jax.block_until_ready(optional_resize_center_crop_to_multiple(x2, multiple))
    assert y2.shape == x2.shape and bool(jnp.array_equal(y2, x2))

    # Case 3: bf16 input; H=24 exercises the host-side sublane padding (Hp=32).
    xb = jax.random.uniform(jax.random.PRNGKey(2), (2, 4, 24, 20),
                            dtype=jnp.float32).astype(jnp.bfloat16)
    yb = jax.block_until_ready(optional_resize_center_crop_to_multiple(xb, multiple))
    assert yb.shape == (2, 4, 64, 64) and yb.dtype == jnp.bfloat16
    refb = _reference_bilinear(xb, multiple)
    errb = float(jnp.max(jnp.abs(yb.astype(jnp.float32) - refb)))
    assert errb < 2.5e-2, errb

    # Case 4: exact path (f32 MXU operands, no bf16 down-cast of the planes).
    y4 = jax.block_until_ready(
        optional_resize_center_crop_to_multiple(x, multiple, allow_bf16_mxu=False))
    err4 = float(jnp.max(jnp.abs(y4.astype(jnp.float32) - ref)))
    assert err4 < 1e-2, err4

    print("KERNEL_OK")
</pallas_src>

<mosaic_0001>
module attributes {stable_mosaic.version = 11 : i64} {
  func.func @_resize_crop_kernel(%arg0: i32, %arg1: memref<4x16x20xf32, #tpu.memory_space<vmem>>, %arg2: memref<64x16xbf16, #tpu.memory_space<vmem>>, %arg3: memref<20x64xbf16, #tpu.memory_space<vmem>>, %arg4: memref<1x64x256xf32, #tpu.memory_space<vmem>>) attributes {dimension_semantics = [#tpu.dimension_semantics<parallel>], iteration_bounds = array<i64: 2>, scalar_prefetch = 0 : i64, scratch_operands = 0 : i64, tpu.core_type = #tpu.core_type<tc>, window_params = [{transform_indices = @transform_0, window_bounds = array<i64: 4, 16, 20>}, {pipeline_mode = #tpu.pipeline_mode<synchronous>, transform_indices = @transform_1, window_bounds = array<i64: 64, 16>}, {pipeline_mode = #tpu.pipeline_mode<synchronous>, transform_indices = @transform_2, window_bounds = array<i64: 20, 64>}, {transform_indices = @transform_3, window_bounds = array<i64: 1, 64, 256>}]} {
    %c0 = arith.constant 0 : index
    %c0_0 = arith.constant 0 : index
    %c0_1 = arith.constant 0 : index
    %0 = vector.load %arg1[%c0, %c0_0, %c0_1] : memref<4x16x20xf32, #tpu.memory_space<vmem>>, vector<4x16x20xf32>
    %1 = vector.shape_cast %0 : vector<4x16x20xf32> to vector<64x20xf32>
    %2 = arith.truncf %1 : vector<64x20xf32> to vector<64x20xbf16>
    %c0_2 = arith.constant 0 : index
    %c0_3 = arith.constant 0 : index
    %3 = vector.load %arg3[%c0_2, %c0_3] : memref<20x64xbf16, #tpu.memory_space<vmem>>, vector<20x64xbf16>
    %cst = arith.constant dense<0.000000e+00> : vector<64x64xf32>
    %4 = tpu.matmul %2, %3, %cst {dimension_numbers = #tpu.dot_dimension_numbers<[1], [0], [0], [1], [0, 0, 1, 1], [], []>} : vector<64x20xbf16>, vector<20x64xbf16>, vector<64x64xf32> -> vector<64x64xf32>
    %5 = arith.truncf %4 : vector<64x64xf32> to vector<64x64xbf16>
    %6 = vector.extract_strided_slice %5 {offsets = [0, 0], sizes = [16, 64], strides = [1, 1]} : vector<64x64xbf16> to vector<16x64xbf16>
    %7 = vector.extract_strided_slice %5 {offsets = [16, 0], sizes = [16, 64], strides = [1, 1]} : vector<64x64xbf16> to vector<16x64xbf16>
    %8 = vector.extract_strided_slice %5 {offsets = [32, 0], sizes = [16, 64], strides = [1, 1]} : vector<64x64xbf16> to vector<16x64xbf16>
    %9 = vector.extract_strided_slice %5 {offsets = [48, 0], sizes = [16, 64], strides = [1, 1]} : vector<64x64xbf16> to vector<16x64xbf16>
    %10 = tpu.concatenate %6, %7, %8, %9 in 1 : vector<16x64xbf16>, vector<16x64xbf16>, vector<16x64xbf16>, vector<16x64xbf16> -> vector<16x256xbf16>
    %c0_4 = arith.constant 0 : index
    %c0_5 = arith.constant 0 : index
    %11 = vector.load %arg2[%c0_4, %c0_5] : memref<64x16xbf16, #tpu.memory_space<vmem>>, vector<64x16xbf16>
    %cst_6 = arith.constant dense<0.000000e+00> : vector<64x256xf32>
    %12 = tpu.matmul %11, %10, %cst_6 {dimension_numbers = #tpu.dot_dimension_numbers<[1], [0], [0], [1], [0, 0, 1, 1], [], []>} : vector<64x16xbf16>, vector<16x256xbf16>, vector<64x256xf32> -> vector<64x256xf32>
    %c0_7 = arith.constant 0 : index
    %c0_8 = arith.constant 0 : index
    %c0_9 = arith.constant 0 : index
    %13 = vector.load %arg4[%c0_7, %c0_8, %c0_9] : memref<1x64x256xf32, #tpu.memory_space<vmem>>, vector<1x64x256xf32>
    %14 = vector.shape_cast %13 : vector<1x64x256xf32> to vector<64x256xf32>
    %15 = vector.shape_cast %12 : vector<64x256xf32> to vector<1x64x256xf32>
    tpu.vector_store %arg4[%c0_7, %c0_8, %c0_9], %15 {strides = array<i32>} : memref<1x64x256xf32, #tpu.memory_space<vmem>>, vector<1x64x256xf32>,
    return
  }
  func.func @transform_0(%arg0: i32) -> (i32, i32, i32) {
    %c0_i32 = arith.constant 0 : i32
    %c0_i32_0 = arith.constant 0 : i32
    %c0_i32_1 = arith.constant 0 : i32
    return %arg0, %c0_i32, %c0_i32_0 : i32, i32, i32
  }
  func.func @transform_1(%arg0: i32) -> (i32, i32) {
    %c0_i32 = arith.constant 0 : i32
    %c0_i32_0 = arith.constant 0 : i32
    %c0_i32_1 = arith.constant 0 : i32
    return %c0_i32, %c0_i32_0 : i32, i32
  }
  func.func @transform_2(%arg0: i32) -> (i32, i32) {
    %c0_i32 = arith.constant 0 : i32
    %c0_i32_0 = arith.constant 0 : i32
    %c0_i32_1 = arith.constant 0 : i32
    return %c0_i32, %c0_i32_0 : i32, i32
  }
  func.func @transform_3(%arg0: i32) -> (i32, i32, i32) {
    %c0_i32 = arith.constant 0 : i32
    %c0_i32_0 = arith.constant 0 : i32
    %c0_i32_1 = arith.constant 0 : i32
    return %arg0, %c0_i32, %c0_i32_0 : i32, i32, i32
  }
}

</mosaic_0001>

<llo_original>
// kernel: tpu_custom_call.1
$region0: #{tpu_custom_call.1}
  #allocation0 [shape = 'u32[]', space=smem, size = 0x4, offset = 0x4, fixed_abs, tag = 'smem constant byte address 0x4 - core index']
  #allocation1 [shape = 'u32[144,128]{1,0:T(1,128)}', space=vmem, size = 0x12000, scoped, tag = 'internal scratch']
  %s0 = inlined_call_operand.hbm [shape: f32[8,16,20], index: 0, kind: input, shape index: {}]
  %s1 = inlined_call_operand.vmem [shape: bf16[64,16], index: 1, kind: input, shape index: {}]
  %s2 = inlined_call_operand.vmem [shape: bf16[20,64], index: 2, kind: input, shape index: {}]
  %s3 = inlined_call_operand.hbm [shape: f32[2,64,256], index: 3, kind: output, shape index: {}]
  %s4 = sld [smem:[#allocation0]]
  $region49: #{tpu_custom_call.1} parent=0
    _
  %s6 = ssub.s32 1, %s4
  %s7 = scalar_select 0, %s6, %s4
  $region1: #{tpu_custom_call.1} parent=0
    #allocation2 [shape = 'u8[65536]{0}', space=vmem, size = 0x10000, scoped, tag = 'input window, operand 0']
    #allocation3 [shape = 's32[2]{0}', space=sflag, size = 0x8, scoped, tag = 'scoped memory for tpu_custom_call.1']
    #allocation4 [shape = 's32[2]{0}', space=sflag, size = 0x8, scoped, tag = 'scoped memory for tpu_custom_call.1']
    #allocation5 [shape = 'u8[131072]{0}', space=vmem, size = 0x20000, scoped, tag = 'output window, operand 0']
    %8 = vsyncpa [#allocation3], 0
    %s9 = scalar_lea.sflag [#allocation3], 1
    %10 = vsyncpa %s9, 0
    %11 = vsyncpa [#allocation4], 0
    %s12 = scalar_lea.sflag [#allocation4], 1
    %13 = vsyncpa %s12, 0
    loop: start=0, step=1, limit=4
    $region2: #{tpu_custom_call.1} parent=1 // loop_pre_header
      _
    $region3: #{tpu_custom_call.1} parent=1 // loop_header
      %s15 = sphi 0, %s19
      %p16 = scmp.ge.s32.totalorder %s15, 4
      %s25 = sphi 0, %s27
      %s28 = sphi 0, %s25
      %s29 = sphi 0, %s28
      %s45 = sphi 0, %s29
      %s49 = sphi 0, %s49
      %s51 = sphi 0, %s49
      %s52 = sphi 0, %s51
      %s66 = sphi 0, %s52
      %s70 = sphi 0, %s70
      %s72 = sphi 0, %s70
      %s73 = sphi 0, %s72
      %s87 = sphi 0, %s73
      %s93 = sphi 0, %s95
      %s96 = sphi 0, %s93
      %s97 = sphi 0, %s96
      %s113 = sphi 0, %s97
    $region4: #{tpu_custom_call.1} parent=1 // loop_header_branch
      %18 = sbr.rel (%p16) target = $region8
    $region5: #{tpu_custom_call.1} parent=1 // loop_body
      %s20 = ssub.s32 %s15, 1
      %s21 = ssub.s32 %s15, 2
      %s22 = sadd.s32 %s15, 1
      %s23 = ssub.s32 %s15, %s22
      %p24 = scmp.eq.s32.totalorder %s23, 0
      %s26 = sadd.s32 %s25, 1
      %s27 = scalar_select %p24, %s25, %s26
      %p30 = pneg %p24
      %p31 = scmp.eq.s32.totalorder %s15, 1
      %p32 = por %p30, %p31
      %p33 = scmp.ne.s32.totalorder %s25, %s28
      %p34 = scmp.eq.s32.totalorder %s15, 0
      %p35 = por %p33, %p34
      %p36 = scmp.ne.s32.totalorder %s25, %s28
      %p37 = scmp.eq.s32.totalorder %s20, 1
      %p38 = por %p36, %p37
      %p39 = scmp.ne.s32.totalorder %s28, %s29
      %p40 = scmp.eq.s32.totalorder %s20, 0
      %p41 = por %p39, %p40
      %p42 = scmp.ne.s32.totalorder %s28, %s29
      %p43 = scmp.eq.s32.totalorder %s21, 1
      %p44 = por %p42, %p43
      %p46 = scmp.ne.s32.totalorder %s29, %s45
      %p47 = scmp.eq.s32.totalorder %s21, 0
      %p48 = por %p46, %p47
      %s50 = sadd.s32 %s49, 1
      %p53 = scmp.eq.s32.totalorder %s15, 1
      %p54 = scmp.ne.s32.totalorder %s49, %s51
      %p55 = scmp.eq.s32.totalorder %s15, 0
      %p56 = por %p54, %p55
      %p57 = scmp.ne.s32.totalorder %s49, %s51
      %p58 = scmp.eq.s32.totalorder %s20, 1
      %p59 = por %p57, %p58
      %p60 = scmp.ne.s32.totalorder %s51, %s52
      %p61 = scmp.eq.s32.totalorder %s20, 0
      %p62 = por %p60, %p61
      %p63 = scmp.ne.s32.totalorder %s51, %s52
      %p64 = scmp.eq.s32.totalorder %s21, 1
      %p65 = por %p63, %p64
      %p67 = scmp.ne.s32.totalorder %s52, %s66
      %p68 = scmp.eq.s32.totalorder %s21, 0
      %p69 = por %p67, %p68
      %s71 = sadd.s32 %s70, 1
      %p74 = scmp.eq.s32.totalorder %s15, 1
      %p75 = scmp.ne.s32.totalorder %s70, %s72
      %p76 = scmp.eq.s32.totalorder %s15, 0
      %p77 = por %p75, %p76
      %p78 = scmp.ne.s32.totalorder %s70, %s72
      %p79 = scmp.eq.s32.totalorder %s20, 1
      %p80 = por %p78, %p79
      %p81 = scmp.ne.s32.totalorder %s72, %s73
      %p82 = scmp.eq.s32.totalorder %s20, 0
      %p83 = por %p81, %p82
      %p84 = scmp.ne.s32.totalorder %s72, %s73
      %p85 = scmp.eq.s32.totalorder %s21, 1
      %p86 = por %p84, %p85
      %p88 = scmp.ne.s32.totalorder %s73, %s87
      %p89 = scmp.eq.s32.totalorder %s21, 0
      %p90 = por %p88, %p89
      %s91 = ssub.s32 %s15, %s22
      %p92 = scmp.eq.s32.totalorder %s91, 0
      %s94 = sadd.s32 %s93, 1
      %s95 = scalar_select %p92, %s93, %s94
      %p98 = pneg %p92
      %p99 = scmp.eq.s32.totalorder %s15, 1
      %p100 = por %p98, %p99
      %p101 = scmp.ne.s32.totalorder %s93, %s96
      %p102 = scmp.eq.s32.totalorder %s15, 0
      %p103 = por %p101, %p102
      %p104 = scmp.ne.s32.totalorder %s93, %s96
      %p105 = scmp.eq.s32.totalorder %s20, 1
      %p106 = por %p104, %p105
      %p107 = scmp.ne.s32.totalorder %s96, %s97
      %p108 = scmp.eq.s32.totalorder %s20, 0
      %p109 = por %p107, %p108
      %p110 = scmp.ne.s32.totalorder %s96, %s97
      %p111 = scmp.eq.s32.totalorder %s21, 1
      %p112 = por %p110, %p111
      %p114 = scmp.ne.s32.totalorder %s97, %s113
      %p115 = scmp.eq.s32.totalorder %s21, 0
      %p116 = por %p114, %p115
      %p117 = scmp.le.s32.totalorder 1, %s15
      %p118 = scmp.lt.s32.totalorder %s15, 3
      %p119 = pnand %p117, %p118
      %p120 = pneg %p119
      // Predicated region
      $region9: #{tpu_custom_call.1} parent=5 // pred_check
        _
      $region10: #{tpu_custom_call.1} parent=5 // pred_check_branch
        %122 = sbr.rel (%p119) target = $region12
      $region11: #{tpu_custom_call.1} parent=5 // pred_region
        %s123 = ssub.s32 %s15, 1
        // Predicated region
        $region13: #{tpu_custom_call.1} parent=11 // pred_check
          %p124 = pneg %p62
        $region14: #{tpu_custom_call.1} parent=11 // pred_check_branch
          %126 = sbr.rel (%p124) target = $region16
        $region15: #{tpu_custom_call.1} parent=11 // pred_region
          _
        $region16: #{tpu_custom_call.1} parent=11 // pred_fallthru
          _
        // Predicated region
        $region17: #{tpu_custom_call.1} parent=11 // pred_check
          %p127 = pneg %p83
        $region18: #{tpu_custom_call.1} parent=11 // pred_check_branch
          %129 = sbr.rel (%p127) target = $region20
        $region19: #{tpu_custom_call.1} parent=11 // pred_region
          _
        $region20: #{tpu_custom_call.1} parent=11 // pred_fallthru
          _
      $region12: #{tpu_custom_call.1} parent=5 // pred_fallthru
        _
      %p130 = scmp.lt.s32.totalorder %s15, 2
      // Predicated region
      $region21: #{tpu_custom_call.1} parent=5 // pred_check
        %p131 = pneg %p130
      $region22: #{tpu_custom_call.1} parent=5 // pred_check_branch
        %133 = sbr.rel (%p131) target = $region24
      $region23: #{tpu_custom_call.1} parent=5 // pred_region
        // Predicated region
        $region25: #{tpu_custom_call.1} parent=23 // pred_check
          %p134 = pneg %p35
        $region26: #{tpu_custom_call.1} parent=23 // pred_check_branch
          %136 = sbr.rel (%p134) target = $region28
        $region27: #{tpu_custom_call.1} parent=23 // pred_region
          %s137 = sand.u32 %s25, 1
          %s138 = scalar_lea.sflag [#allocation3], %s137
          %s139 = sand.u32 %s25, 1
          %s140 = smul.addr %s139, 64
          %s141 = scalar_lea.vmem [#allocation2], %s140
          %s142 = smul.u32 4, %s15
          %s144 = ssub.s32 1024, 1024
          %145 = vsyncadd %s138, %s144
          %s146 = smul.addr %s142, 2
          %s147 = smul.addr %s146, 128
          %s148 = scalar_lea.hbm %s0, %s147
          %s149 = sshll.u32 %s141, 4
          %s150 = int_to_ptr.vmem [resolvable:$true] %s149
          %155 = dma.hbm_to_vmem [thread:$0]  %s148, 1024, %s150, %s138, 128, 128, 8
        $region28: #{tpu_custom_call.1} parent=23 // pred_fallthru
          _
      $region24: #{tpu_custom_call.1} parent=5 // pred_fallthru
        _
      %p156 = scmp.le.s32.totalorder 1, %s15
      %p157 = scmp.lt.s32.totalorder %s15, 3
      %p158 = pnand %p156, %p157
      %p159 = pneg %p158
      // Predicated region
      $region29: #{tpu_custom_call.1} parent=5 // pred_check
        _
      $region30: #{tpu_custom_call.1} parent=5 // pred_check_branch
        %161 = sbr.rel (%p158) target = $region32
      $region31: #{tpu_custom_call.1} parent=5 // pred_region
        %s162 = ssub.s32 %s15, 1
        %s163 = sand.u32 %s28, 1
        %s164 = scalar_lea.sflag [#allocation3], %s163
        %s165 = sand.u32 %s28, 1
        %s166 = smul.addr %s165, 64
        %s167 = scalar_lea.vmem [#allocation2], %s166
        // Predicated region
        $region33: #{tpu_custom_call.1} parent=31 // pred_check
          %p168 = pneg %p41
        $region34: #{tpu_custom_call.1} parent=31 // pred_check_branch
          %170 = sbr.rel (%p168) target = $region36
        $region35: #{tpu_custom_call.1} parent=31 // pred_region
          %171 = dma.done %s164, 1024
        $region36: #{tpu_custom_call.1} parent=31 // pred_fallthru
          _
        %s172 = sand.u32 %s28, 1
        %s173 = scalar_lea.sflag [#allocation3], %s172
        %s174 = sand.u32 %s28, 1
        %s175 = smul.addr %s174, 64
        %s176 = scalar_lea.vmem [#allocation2], %s175
        %p177 = pneg %p41
        %p178 = pneg %p38
        %p179 = pneg %p62
        %p180 = pneg %p59
        %p181 = pneg %p83
        %p182 = pneg %p80
        %p183 = pneg %p109
        %p184 = pneg %p106
        %s185 = sand.u32 %s96, 1
        %s186 = scalar_lea.sflag [#allocation4], %s185
        %s187 = sand.u32 %s96, 1
        %s188 = smul.addr %s187, 128
        %s189 = scalar_lea.vmem [#allocation5], %s188
        %s190 = smul.u32 4, %s20
        %v192 = vld [vmem:[%s167] sm:$0xff]
        %v193 = vld [vmem:[%s167 + $0x8] sm:$0xff]
        %v194 = vld [vmem:[%s167 + $0x10] sm:$0xff]
        %v195 = vld [vmem:[%s167 + $0x18] sm:$0xff]
        %v196 = vld [vmem:[%s167 + $0x20] sm:$0xff]
        %v197 = vld [vmem:[%s167 + $0x28] sm:$0xff]
        %v198 = vld [vmem:[%s167 + $0x30] sm:$0xff]
        %v199 = vld [vmem:[%s167 + $0x38] sm:$0xff]
        %v200 = vpack.c.bf16 %v193, %v192
        %v201 = vpack.c.bf16 %v195, %v194
        %v202 = vpack.c.bf16 %v197, %v196
        %v203 = vpack.c.bf16 %v199, %v198
        %v204 = vld [vmem:[%s2] sm:$0xf]
        %v205 = vld [vmem:[%s2 + $0x4] sm:$0xf]
        %v206 = vld [vmem:[%s2 + $0x8] sm:$0x3]
        %v210 = vunpack.c.l.b16 %v204
        %v211 = vunpack.c.l.b16 %v205
        %v212 = vunpack.c.l.b16 %v206
        %v213 = vpack.c.b16 %v211, %v210
        %v214 = vpack.c.b16 %v212, %v212
        %vm216 = vcmask 162816
        %v218 = vsel %vm216, %v200, 0
        %v221 = vsel %vm216, %v201, 0
        %v224 = vsel %vm216, %v202, 0
        %v227 = vsel %vm216, %v203, 0
        %vm229 = vcmask 1041408
        %v231 = vsel %vm229, %v214, 0
        %233 = vmatprep.subr.bf16.mxu0 0
        %234 = vmatpush1.bf16.msra.mxu0 0
        %235 = vmatprep.subr.bf16.mxu0 0
        %236 = vmatpush1.bf16.msra.mxu0 0
        %237 = vmatprep.subr.bf16.mxu0 0
        %238 = vmatpush1.bf16.msra.mxu0 0
        %239 = vmatprep.subr.bf16.mxu0 0
        %240 = vmatpush1.bf16.msra.mxu0 0
        %241 = vmatprep.subr.bf16.mxu0 0
        %242 = vmatpush1.bf16.msra.mxu0 0
        %243 = vmatprep.subr.bf16.mxu0 0
        %244 = vmatpush1.bf16.msra.mxu0 0
        %245 = vmatprep.subr.bf16.mxu0 0
        %246 = vmatpush1.bf16.msra.mxu0 %v231
        %247 = vmatprep.subr.bf16.mxu0 0
        %248 = vmatpush1.bf16.msra.mxu0 %v213
        %249 = vmatprep.subr.bf16.mxu0 0
        %250 = vmatpush2.bf16.msra.mxu0 0
        %251 = vmatprep.subr.bf16.mxu0 0
        %252 = vmatpush2.bf16.msra.mxu0 0
        %253 = vmatprep.subr.bf16.mxu0 0
        %254 = vmatpush2.bf16.msra.mxu0 0
        %255 = vmatprep.subr.bf16.mxu0 0
        %256 = vmatpush2.bf16.msra.mxu0 0
        %257 = vmatprep.subr.bf16.mxu0 0
        %258 = vmatpush2.bf16.msra.mxu0 0
        %259 = vmatprep.subr.bf16.mxu0 0
        %260 = vmatpush2.bf16.msra.mxu0 0
        %261 = vmatprep.subr.bf16.mxu0 0
        %262 = vmatpush2.bf16.msra.mxu0 0
        %263 = vmatprep.subr.bf16.mxu0 0
        %264 = vmatpush2.bf16.msra.mxu0 0
        %265 = vmatprep.mubr.bf16.mxu0 0
        %266 = vmatmul.mubr.bf16.gmra.mxu0 %v218
        %v267 = vpop.f32.mrf.mxu0
        %v268 = vadd.f32 0.0, %v267
        %v269 = vpop.f32.mrf.mxu0
        %v270 = vpop.f32.mrf.mxu0
        %v271 = vadd.f32 0.0, %v270
        %v272 = vpop.f32.mrf.mxu0
        %273 = vmatprep.mubr.bf16.mxu0 0
        %274 = vmatmul.mubr.bf16.gmra.mxu0 %v221
        %v275 = vpop.f32.mrf.mxu0
        %v276 = vadd.f32 0.0, %v275
        %v277 = vpop.f32.mrf.mxu0
        %v278 = vpop.f32.mrf.mxu0
        %v279 = vadd.f32 0.0, %v278
        %v280 = vpop.f32.mrf.mxu0
        %281 = vmatprep.mubr.bf16.mxu0 0
        %282 = vmatmul.mubr.bf16.gmra.mxu0 %v224
        %v283 = vpop.f32.mrf.mxu0
        %v284 = vadd.f32 0.0, %v283
        %v285 = vpop.f32.mrf.mxu0
        %v286 = vpop.f32.mrf.mxu0
        %v287 = vadd.f32 0.0, %v286
        %v288 = vpop.f32.mrf.mxu0
        %289 = vmatprep.mubr.bf16.mxu0 0
        %290 = vmatmul.mubr.bf16.gmra.mxu0 %v227
        %v291 = vpop.f32.mrf.mxu0
        %v292 = vadd.f32 0.0, %v291
        %v293 = vpop.f32.mrf.mxu0
        %v294 = vpop.f32.mrf.mxu0
        %v295 = vadd.f32 0.0, %v294
        %v296 = vpop.f32.mrf.mxu0
        %297 = vdwg.mxu0
        %v298 = vpack.c.bf16 %v271, %v268
        %v299 = vpack.c.bf16 %v279, %v276
        %v300 = vpack.c.bf16 %v287, %v284
        %v301 = vpack.c.bf16 %v295, %v292
        %303 = vrot.lane.b32.xlu0 %v299, 64
        %v304 = vpop.permute.xlu0 %303
        %306 = vrot.lane.b32.xlu0 %v301, 64
        %v307 = vpop.permute.xlu0 %306
        %vm308 = vcmask 523264
        %v311 = vsel %vm308, %v298, %v304
        %v315 = vsel %vm308, %v300, %v307
        %v317 = vld [vmem:[%s1] sm:$0xf]
        %v318 = vld [vmem:[%s1 + $0x4] sm:$0xf]
        %v319 = vld [vmem:[%s1 + $0x8] sm:$0xf]
        %v320 = vld [vmem:[%s1 + $0xc] sm:$0xf]
        %v321 = vld [vmem:[%s1 + $0x10] sm:$0xf]
        %v322 = vld [vmem:[%s1 + $0x14] sm:$0xf]
        %v323 = vld [vmem:[%s1 + $0x18] sm:$0xf]
        %v324 = vld [vmem:[%s1 + $0x1c] sm:$0xf]
        %v333 = vunpack.c.l.b16 %v317
        %v334 = vunpack.c.l.b16 %v318
        %v335 = vunpack.c.l.b16 %v319
        %v336 = vunpack.c.l.b16 %v320
        %v337 = vunpack.c.l.b16 %v321
        %v338 = vunpack.c.l.b16 %v322
        %v339 = vunpack.c.l.b16 %v323
        %v340 = vunpack.c.l.b16 %v324
        %v341 = vpack.c.b16 %v334, %v333
        %v342 = vpack.c.b16 %v336, %v335
        %v343 = vpack.c.b16 %v338, %v337
        %v344 = vpack.c.b16 %v340, %v339
        %vm345 = vcmask 130048
        %v347 = vsel %vm345, %v341, 0
        %v350 = vsel %vm345, %v342, 0
        %v353 = vsel %vm345, %v343, 0
        %v356 = vsel %vm345, %v344, 0
        %358 = vmatprep.subr.bf16.mxu0 0
        %359 = vmatpush1.bf16.msra.mxu0 0
        %360 = vmatprep.subr.bf16.mxu0 0
        %361 = vmatpush1.bf16.msra.mxu0 0
        %362 = vmatprep.subr.bf16.mxu0 0
        %363 = vmatpush1.bf16.msra.mxu0 0
        %364 = vmatprep.subr.bf16.mxu0 0
        %365 = vmatpush1.bf16.msra.mxu0 0
        %366 = vmatprep.subr.bf16.mxu0 0
        %367 = vmatpush1.bf16.msra.mxu0 0
        %368 = vmatprep.subr.bf16.mxu0 0
        %369 = vmatpush1.bf16.msra.mxu0 0
        %370 = vmatprep.subr.bf16.mxu0 0
        %371 = vmatpush1.bf16.msra.mxu0 0
        %372 = vmatprep.subr.bf16.mxu0 %v315
        %373 = vmatpush1.bf16.msra.mxu0 %v311
        %374 = vmatprep.subr.bf16.mxu0 0
        %375 = vmatpush2.bf16.msra.mxu0 0
        %376 = vmatprep.subr.bf16.mxu0 0
        %377 = vmatpush2.bf16.msra.mxu0 0
        %378 = vmatprep.subr.bf16.mxu0 0
        %379 = vmatpush2.bf16.msra.mxu0 0
        %380 = vmatprep.subr.bf16.mxu0 0
        %381 = vmatpush2.bf16.msra.mxu0 0
        %382 = vmatprep.subr.bf16.mxu0 0
        %383 = vmatpush2.bf16.msra.mxu0 0
        %384 = vmatprep.subr.bf16.mxu0 0
        %385 = vmatpush2.bf16.msra.mxu0 0
        %386 = vmatprep.subr.bf16.mxu0 0
        %387 = vmatpush2.bf16.msra.mxu0 0
        %388 = vmatprep.subr.bf16.mxu0 0
        %389 = vmatpush2.bf16.msra.mxu0 0
        %390 = vmatprep.mubr.bf16.mxu0 0
        %391 = vmatmul.mubr.bf16.gmra.mxu0 %v347
        %v392 = vpop.f32.mrf.mxu0
        %v393 = vadd.f32 0.0, %v392
        %v394 = vpop.f32.mrf.mxu0
        %v395 = vadd.f32 0.0, %v394
        %v396 = vpop.f32.mrf.mxu0
        %v397 = vadd.f32 0.0, %v396
        %v398 = vpop.f32.mrf.mxu0
        %v399 = vadd.f32 0.0, %v398
        %400 = vmatprep.mubr.bf16.mxu0 0
        %401 = vmatmul.mubr.bf16.gmra.mxu0 %v350
        %v402 = vpop.f32.mrf.mxu0
        %v403 = vadd.f32 0.0, %v402
        %v404 = vpop.f32.mrf.mxu0
        %v405 = vadd.f32 0.0, %v404
        %v406 = vpop.f32.mrf.mxu0
        %v407 = vadd.f32 0.0, %v406
        %v408 = vpop.f32.mrf.mxu0
        %v409 = vadd.f32 0.0, %v408
        %410 = vmatprep.mubr.bf16.mxu0 0
        %411 = vmatmul.mubr.bf16.gmra.mxu0 %v353
        %v412 = vpop.f32.mrf.mxu0
        %v413 = vadd.f32 0.0, %v412
        %v414 = vpop.f32.mrf.mxu0
        %v415 = vadd.f32 0.0, %v414
        %v416 = vpop.f32.mrf.mxu0
        %v417 = vadd.f32 0.0, %v416
        %v418 = vpop.f32.mrf.mxu0
        %v419 = vadd.f32 0.0, %v418
        %420 = vmatprep.mubr.bf16.mxu0 0
        %421 = vmatmul.mubr.bf16.gmra.mxu0 %v356
        %v422 = vpop.f32.mrf.mxu0
        %v423 = vadd.f32 0.0, %v422
        %v424 = vpop.f32.mrf.mxu0
        %v425 = vadd.f32 0.0, %v424
        %v426 = vpop.f32.mrf.mxu0
        %v427 = vadd.f32 0.0, %v426
        %v428 = vpop.f32.mrf.mxu0
        %v429 = vadd.f32 0.0, %v428
        %430 = vdwg.mxu0
        %431 = vst [vmem:[%s189] sm:$0xff] %v393
        %432 = vst [vmem:[%s189 + $0x8] sm:$0xff] %v395
        %433 = vst [vmem:[%s189 + $0x10] sm:$0xff] %v397
        %434 = vst [vmem:[%s189 + $0x18] sm:$0xff] %v399
        %435 = vst [vmem:[%s189 + $0x20] sm:$0xff] %v403
        %436 = vst [vmem:[%s189 + $0x28] sm:$0xff] %v405
        %437 = vst [vmem:[%s189 + $0x30] sm:$0xff] %v407
        %438 = vst [vmem:[%s189 + $0x38] sm:$0xff] %v409
        %439 = vst [vmem:[%s189 + $0x40] sm:$0xff] %v413
        %440 = vst [vmem:[%s189 + $0x48] sm:$0xff] %v415
        %441 = vst [vmem:[%s189 + $0x50] sm:$0xff] %v417
        %442 = vst [vmem:[%s189 + $0x58] sm:$0xff] %v419
        %443 = vst [vmem:[%s189 + $0x60] sm:$0xff] %v423
        %444 = vst [vmem:[%s189 + $0x68] sm:$0xff] %v425
        %445 = vst [vmem:[%s189 + $0x70] sm:$0xff] %v427
        %446 = vst [vmem:[%s189 + $0x78] sm:$0xff] %v429
        %s447 = sand.u32 %s96, 1
        %s448 = scalar_lea.sflag [#allocation4], %s447
        %s449 = sand.u32 %s96, 1
        %s450 = smul.addr %s449, 128
        %s451 = scalar_lea.vmem [#allocation5], %s450
        // Predicated region
        $region37: #{tpu_custom_call.1} parent=31 // pred_check
          %p452 = pneg %p106
        $region38: #{tpu_custom_call.1} parent=31 // pred_check_branch
          %454 = sbr.rel (%p452) target = $region40
        $region39: #{tpu_custom_call.1} parent=31 // pred_region
          %s456 = ssub.s32 2048, 2048
          %457 = vsyncadd %s448, %s456
          %s458 = smul.addr %s20, 16
          %s459 = smul.addr %s458, 128
          %s460 = scalar_lea.hbm %s3, %s459
          %s461 = sshll.u32 %s451, 4
          %s462 = int_to_ptr.vmem [resolvable:$true] %s461
          %467 = dma.vmem_to_hbm [thread:$0]  %s462, 2048, %s460, %s448, 256, 256, 16
        $region40: #{tpu_custom_call.1} parent=31 // pred_fallthru
          _
      $region32: #{tpu_custom_call.1} parent=5 // pred_fallthru
        _
      %p468 = scmp.le.s32.totalorder 2, %s15
      // Predicated region
      $region41: #{tpu_custom_call.1} parent=5 // pred_check
        %p469 = pneg %p468
      $region42: #{tpu_custom_call.1} parent=5 // pred_check_branch
        %471 = sbr.rel (%p469) target = $region44
      $region43: #{tpu_custom_call.1} parent=5 // pred_region
        %s472 = ssub.s32 %s15, 2
        // Predicated region
        $region45: #{tpu_custom_call.1} parent=43 // pred_check
          %p473 = pneg %p112
        $region46: #{tpu_custom_call.1} parent=43 // pred_check_branch
          %475 = sbr.rel (%p473) target = $region48
        $region47: #{tpu_custom_call.1} parent=43 // pred_region
          %s476 = sand.u32 %s97, 1
          %s477 = scalar_lea.sflag [#allocation4], %s476
          %s478 = sand.u32 %s97, 1
          %s479 = smul.addr %s478, 128
          %s480 = scalar_lea.vmem [#allocation5], %s479
          %481 = dma.done %s477, 2048
        $region48: #{tpu_custom_call.1} parent=43 // pred_fallthru
          _
      $region44: #{tpu_custom_call.1} parent=5 // pred_fallthru
        _
    $region6: #{tpu_custom_call.1} parent=1 // loop_footer
      %s19 = sadd.s32 1, %s15
    $region7: #{tpu_custom_call.1} parent=1 // loop_footer_branch
      %14 = sbr.rel target = $region3
    $region8: #{tpu_custom_call.1} parent=1 // loop_exit
      _
    %482 = vsyncpa [#allocation3], 1
    %s483 = scalar_lea.sflag [#allocation3], 1
    %484 = vsyncpa %s483, 1
    %485 = vsyncpa [#allocation4], 1
    %s486 = scalar_lea.sflag [#allocation4], 1
    %487 = vsyncpa %s486, 1

</llo_original>
